<compile_context>
chip_gen: v7x
topology: tpu7x:2x2x1
jax: 0.10.0
libtpu: 0.0.40
codegen_flags: <defaults>
</compile_context>

<pallas_src>
import functools

import jax
import jax.numpy as jnp
from jax.experimental import pallas as pl
from jax.experimental.pallas import tpu as pltpu

NEG_INF = -1e30          # additive mask constant (exactly representable in bf16 range)
BN_EPS = 1e-5            # torch.nn.BatchNorm1d default
VMEM_LIMIT = 64 * 1024 * 1024


def _round_up(n, m):
    return ((n + m - 1) // m) * m


def _pick_tiles(n):
    """Return (padded N, destination-row tile).

    Single tile for small graphs; 256-row (128 for very large N) tiles
    otherwise so the [td, N] softmax working set stays inside v7x's 64 MiB
    VMEM while keeping per-step overhead amortized.
    """
    if n <= 256:
        n_pad = _round_up(n, 8)
        return n_pad, n_pad
    td = 256 if n <= 8192 else 128
    return _round_up(n, td), td


def _softmax_dtype():
    """bf16 elementwise softmax chain on v6e/v7x (packed VPU/EUP); f32 on v5e."""
    try:
        kind = jax.devices()[0].device_kind.lower()
    except Exception:
        kind = ""
    return jnp.float32 if "v5" in kind else jnp.bfloat16


# ----------------------------------------------------------------------------
# Pass 1 (per layer): projection + attention logits, hoisted out of the
# destination-tile grid.  Tiled over node rows ("parallel").
# ----------------------------------------------------------------------------
def _proj_kernel(x_ref, w_ref, att_ref, xp_ref, a_ref, *, num_heads, head_dim):
    H, C = num_heads, head_dim
    xp = jnp.dot(x_ref[...], w_ref[...],
                 preferred_element_type=jnp.float32)        # [tn, H*C]
    # Attention logits for all heads / both roles in ONE matmul: [tn, 2H].
    a_ref[...] = jnp.dot(xp, att_ref[...],
                         preferred_element_type=jnp.float32)
    # Store xp head-major (bf16) so the attention kernel indexes whole heads
    # (no lane-slicing copies of the aggregation RHS per grid step).
    xp_bf = xp.astype(jnp.bfloat16)
    for h in range(H):
        xp_ref[h] = xp_bf[:, h * C:(h + 1) * C]


# ----------------------------------------------------------------------------
# Pass 2 (per layer): masked softmax attention + aggregation + fused
# (bias, head-mean, BN, ReLU) epilogue.  Grid over destination-row tiles.
# ----------------------------------------------------------------------------
def _gat_attn_kernel(xp_ref, asrcT_ref, adst_ref, adjb_ref, scale_ref,
                     shift_ref, out_ref, *, num_heads, head_dim, apply_relu):
    H, C = num_heads, head_dim
    a_srcT = asrcT_ref[...]                                  # [H, N]  (resident)
    a_dst = adst_ref[...]                                    # [td, H]
    adjb = adjb_ref[...]                                     # [td, N] bf16 mask

    acc = jnp.zeros((out_ref.shape[0], C), jnp.float32)      # [td, C]
    for h in range(H):                                       # static unroll
        e = a_dst[:, h:h + 1] + a_srcT[h:h + 1, :]           # [td, N]
        e = jnp.maximum(e, 0.2 * e)                          # LeakyReLU(0.2)
        e = e + adjb                                         # additive mask
        m = jnp.max(e, axis=-1, keepdims=True)
        p = jnp.exp(e - m)                                   # masked -> 0
        denom = jnp.sum(p, axis=-1, keepdims=True, dtype=jnp.float32)
        inv = pl.reciprocal(denom, approx=True)              # [td, 1] f32 (EUP)
        part = jnp.dot(p.astype(jnp.bfloat16), xp_ref[h],    # [td, C]
                       preferred_element_type=jnp.float32)
        acc = acc + part * inv                               # normalize post-matmul

    out = acc * scale_ref[...] + shift_ref[...]              # folded mean/bias/BN
    if apply_relu:
        out = jnp.maximum(out, 0.0)
    out_ref[...] = out


def _fold_epilogue(bias, bn, num_heads, out_dim):
    """Fold head-mean, conv bias and (optional) inference BN into scale/shift."""
    if bn is None:
        scale = jnp.full((1, out_dim), 1.0 / num_heads, jnp.float32)
        shift = bias.reshape(1, out_dim).astype(jnp.float32)
        return scale, shift, False
    inv = bn["gamma"] * jax.lax.rsqrt(bn["var"] + BN_EPS)
    scale = (inv / num_heads).reshape(1, out_dim)
    shift = (inv * (bias - bn["mean"]) + bn["beta"]).reshape(1, out_dim)
    return scale, shift, True


def gat_conv(x_pad, adj_bias, w, att_src, att_dst, bias, bn, *, td, cdt):
    """One GATConv(heads=H, concat=False) layer (+ fused BN + ReLU if bn given)."""
    n_pad, fin = x_pad.shape
    H, _, C = w.shape
    hc = H * C

    # [H, Fin, C] -> [Fin, H*C]: one projection matmul covers all heads.
    w_flat = jnp.transpose(w, (1, 0, 2)).reshape(fin, hc)
    # Block-diagonal attention matrices, merged into one [H*C, 2H] matrix.
    eye = jnp.eye(H, dtype=jnp.float32)
    a_src_mat = (att_src.reshape(H, C)[:, :, None]
                 * eye[:, None, :]).reshape(hc, H)
    a_dst_mat = (att_dst.reshape(H, C)[:, :, None]
                 * eye[:, None, :]).reshape(hc, H)
    att_cat = jnp.concatenate([a_src_mat, a_dst_mat], axis=1)   # [H*C, 2H]

    # ---- pass 1: projection + logits (computed once per layer) --------------
    xp_heads, a_all = pl.pallas_call(
        functools.partial(_proj_kernel, num_heads=H, head_dim=C),
        out_shape=(jax.ShapeDtypeStruct((H, n_pad, C), jnp.bfloat16),
                   jax.ShapeDtypeStruct((n_pad, 2 * H), jnp.float32)),
        grid_spec=pltpu.PrefetchScalarGridSpec(
            num_scalar_prefetch=0,
            grid=(n_pad // td,),
            in_specs=[
                pl.BlockSpec((td, fin), lambda i: (i, 0)),       # x row tile
                pl.BlockSpec((fin, hc), lambda i: (0, 0)),       # W_flat
                pl.BlockSpec((hc, 2 * H), lambda i: (0, 0)),     # [att_src|att_dst]
            ],
            out_specs=(pl.BlockSpec((H, td, C), lambda i: (0, i, 0)),
                       pl.BlockSpec((td, 2 * H), lambda i: (i, 0))),
        ),
        compiler_params=pltpu.CompilerParams(
            dimension_semantics=("parallel",),
            vmem_limit_bytes=VMEM_LIMIT),
    )(x_pad, w_flat, att_cat)

    # Tiny [N, H] rearrangements once per layer (not per destination tile).
    a_srcT = a_all[:, :H].T.astype(cdt)                          # [H, N] lane-dense
    a_dst = a_all[:, H:].astype(cdt)                             # [N, H]

    scale, shift, relu = _fold_epilogue(bias, bn, H, C)

    # ---- pass 2: masked softmax + aggregation over destination tiles --------
    out = pl.pallas_call(
        functools.partial(_gat_attn_kernel, num_heads=H, head_dim=C,
                          apply_relu=relu),
        out_shape=jax.ShapeDtypeStruct((n_pad, C), jnp.float32),
        grid_spec=pltpu.PrefetchScalarGridSpec(
            num_scalar_prefetch=0,
            grid=(n_pad // td,),
            in_specs=[
                pl.BlockSpec((H, n_pad, C), lambda i: (0, 0, 0)),  # xp (resident)
                pl.BlockSpec((H, n_pad), lambda i: (0, 0)),        # a_src^T (resident)
                pl.BlockSpec((td, H), lambda i: (i, 0)),           # a_dst tile
                pl.BlockSpec((td, n_pad), lambda i: (i, 0)),       # adj bias tile (bf16 stream)
                pl.BlockSpec((1, C), lambda i: (0, 0)),            # scale
                pl.BlockSpec((1, C), lambda i: (0, 0)),            # shift
            ],
            out_specs=pl.BlockSpec((td, C), lambda i: (i, 0)),
        ),
        compiler_params=pltpu.CompilerParams(
            dimension_semantics=("parallel",),
            vmem_limit_bytes=VMEM_LIMIT),
    )(xp_heads, a_srcT, a_dst, adj_bias, scale, shift)
    return out


# ----------------------------------------------------------------------------
# Model glue: parameter init, adjacency bias, forward.
# ----------------------------------------------------------------------------
def init_gat_params(key, in_channels, hidden_channels, out_channels,
                    num_layers, num_heads):
    dims = ([in_channels] + [hidden_channels] * (num_layers - 1)
            + [out_channels])
    params = {"convs": [], "bns": []}
    for i in range(num_layers):
        fin, fout = dims[i], dims[i + 1]
        key, k_w, k_as, k_ad = jax.random.split(key, 4)
        scale = (2.0 / (fin + fout)) ** 0.5
        params["convs"].append({
            "w": scale * jax.random.normal(k_w, (num_heads, fin, fout),
                                           jnp.float32),
            "att_src": 0.1 * jax.random.normal(k_as, (num_heads, 1, fout),
                                               jnp.float32),
            "att_dst": 0.1 * jax.random.normal(k_ad, (num_heads, 1, fout),
                                               jnp.float32),
            "bias": jnp.zeros((1, fout), jnp.float32),
        })
    for _ in range(num_layers - 1):
        key, k_g, k_b, k_m, k_v = jax.random.split(key, 5)
        params["bns"].append({
            "gamma": 1.0 + 0.1 * jax.random.normal(k_g, (1, hidden_channels),
                                                   jnp.float32),
            "beta": 0.1 * jax.random.normal(k_b, (1, hidden_channels),
                                            jnp.float32),
            "mean": 0.1 * jax.random.normal(k_m, (1, hidden_channels),
                                            jnp.float32),
            "var": jax.random.uniform(k_v, (1, hidden_channels), jnp.float32,
                                      0.5, 1.5),
        })
    return params


def build_adj_bias(edge_index, n_pad):
    """Additive softmax bias (bf16): 0 on edges/self-loops, -1e30 elsewhere.

    Built at padded size; padded destination rows keep only their self-loop
    (finite softmax), padded source columns are masked for real rows.
    """
    adj = jnp.zeros((n_pad, n_pad), jnp.float32)
    adj = adj.at[edge_index[1], edge_index[0]].set(1.0)          # dst, src
    adj = jnp.maximum(adj, jnp.eye(n_pad, dtype=jnp.float32))    # self-loops
    return jnp.where(adj > 0, 0.0, NEG_INF).astype(jnp.bfloat16)


def gat_forward(params, x, edge_index, edge_attr=None):
    n = x.shape[0]
    n_pad, td = _pick_tiles(n)
    cdt = _softmax_dtype()
    adj_bias = build_adj_bias(edge_index, n_pad)
    if n_pad != n:
        x = jnp.pad(x, ((0, n_pad - n), (0, 0)))

    convs, bns = params["convs"], params["bns"]
    h = x
    for i, c in enumerate(convs):
        bn = bns[i] if i < len(convs) - 1 else None
        # GATConv (+ BatchNorm1d inference + ReLU fused for non-final layers);
        # dropout is identity at inference time.
        h = gat_conv(h, adj_bias, c["w"], c["att_src"], c["att_dst"],
                     c["bias"], bn, td=td, cdt=cdt)
    # TODO(synk): GraphPrompter's custom GATConv also returns updated
    # edge_attr; with edge_dim unset it is passed through unchanged.
    return h[:n], edge_attr


if __name__ == "__main__":
    # Small, deterministic example consistent with the module's forward.
    N, E = 16, 48
    in_channels, hidden_channels, out_channels = 16, 32, 8
    num_layers, num_heads = 3, 4

    key = jax.random.PRNGKey(0)
    k_x, k_src, k_dst, k_params = jax.random.split(key, 4)
    x = jax.random.normal(k_x, (N, in_channels), jnp.float32)
    src = jax.random.randint(k_src, (E,), 0, N)
    dst = jax.random.randint(k_dst, (E,), 0, N)
    edge_index = jnp.stack([src, dst], axis=0)      # [2, E]

    params = init_gat_params(k_params, in_channels, hidden_channels,
                             out_channels, num_layers, num_heads)

    out, edge_attr = gat_forward(params, x, edge_index, edge_attr=None)
    jax.block_until_ready(out)
    assert out.shape == (N, out_channels)
    assert bool(jnp.all(jnp.isfinite(out)))
    print("KERNEL_OK")
</pallas_src>

<mosaic_0001>
module attributes {stable_mosaic.version = 11 : i64} {
  func.func @_proj_kernel(%arg0: i32, %arg1: memref<16x16xf32, #tpu.memory_space<vmem>>, %arg2: memref<16x128xf32, #tpu.memory_space<vmem>>, %arg3: memref<128x8xf32, #tpu.memory_space<vmem>>, %arg4: memref<4x16x32xbf16, #tpu.memory_space<vmem>>, %arg5: memref<16x8xf32, #tpu.memory_space<vmem>>) attributes {dimension_semantics = [#tpu.dimension_semantics<parallel>], iteration_bounds = array<i64: 1>, scalar_prefetch = 0 : i64, scratch_operands = 0 : i64, tpu.core_type = #tpu.core_type<tc>, window_params = [{transform_indices = @transform_0, window_bounds = array<i64: 16, 16>}, {pipeline_mode = #tpu.pipeline_mode<synchronous>, transform_indices = @transform_1, window_bounds = array<i64: 16, 128>}, {pipeline_mode = #tpu.pipeline_mode<synchronous>, transform_indices = @transform_2, window_bounds = array<i64: 128, 8>}, {transform_indices = @transform_3, window_bounds = array<i64: 4, 16, 32>}, {transform_indices = @transform_4, window_bounds = array<i64: 16, 8>}]} {
    %c0 = arith.constant 0 : index
    %c0_0 = arith.constant 0 : index
    %0 = vector.load %arg1[%c0, %c0_0] : memref<16x16xf32, #tpu.memory_space<vmem>>, vector<16x16xf32>
    %c0_1 = arith.constant 0 : index
    %c0_2 = arith.constant 0 : index
    %1 = vector.load %arg2[%c0_1, %c0_2] : memref<16x128xf32, #tpu.memory_space<vmem>>, vector<16x128xf32>
    %cst = arith.constant dense<0.000000e+00> : vector<16x128xf32>
    %2 = tpu.matmul %0, %1, %cst {dimension_numbers = #tpu.dot_dimension_numbers<[1], [0], [0], [1], [0, 0, 1, 1], [], []>} : vector<16x16xf32>, vector<16x128xf32>, vector<16x128xf32> -> vector<16x128xf32>
    %c0_3 = arith.constant 0 : index
    %c0_4 = arith.constant 0 : index
    %3 = vector.load %arg3[%c0_3, %c0_4] : memref<128x8xf32, #tpu.memory_space<vmem>>, vector<128x8xf32>
    %cst_5 = arith.constant dense<0.000000e+00> : vector<16x8xf32>
    %4 = tpu.matmul %2, %3, %cst_5 {dimension_numbers = #tpu.dot_dimension_numbers<[1], [0], [0], [1], [0, 0, 1, 1], [], []>} : vector<16x128xf32>, vector<128x8xf32>, vector<16x8xf32> -> vector<16x8xf32>
    %c0_6 = arith.constant 0 : index
    %c0_7 = arith.constant 0 : index
    %5 = vector.load %arg5[%c0_6, %c0_7] : memref<16x8xf32, #tpu.memory_space<vmem>>, vector<16x8xf32>
    tpu.vector_store %arg5[%c0_6, %c0_7], %4 {strides = array<i32>} : memref<16x8xf32, #tpu.memory_space<vmem>>, vector<16x8xf32>,
    %6 = arith.truncf %2 : vector<16x128xf32> to vector<16x128xbf16>
    %7 = vector.extract_strided_slice %6 {offsets = [0, 0], sizes = [16, 32], strides = [1, 1]} : vector<16x128xbf16> to vector<16x32xbf16>
    %c0_8 = arith.constant 0 : index
    %c0_9 = arith.constant 0 : index
    %c0_10 = arith.constant 0 : index
    %8 = vector.load %arg4[%c0_8, %c0_9, %c0_10] : memref<4x16x32xbf16, #tpu.memory_space<vmem>>, vector<1x16x32xbf16>
    %9 = vector.shape_cast %8 : vector<1x16x32xbf16> to vector<16x32xbf16>
    %10 = vector.shape_cast %7 : vector<16x32xbf16> to vector<1x16x32xbf16>
    tpu.vector_store %arg4[%c0_8, %c0_9, %c0_10], %10 {strides = array<i32>} : memref<4x16x32xbf16, #tpu.memory_space<vmem>>, vector<1x16x32xbf16>,
    %11 = vector.extract_strided_slice %6 {offsets = [0, 32], sizes = [16, 32], strides = [1, 1]} : vector<16x128xbf16> to vector<16x32xbf16>
    %c1 = arith.constant 1 : index
    %c0_11 = arith.constant 0 : index
    %c0_12 = arith.constant 0 : index
    %12 = vector.load %arg4[%c1, %c0_11, %c0_12] : memref<4x16x32xbf16, #tpu.memory_space<vmem>>, vector<1x16x32xbf16>
    %13 = vector.shape_cast %12 : vector<1x16x32xbf16> to vector<16x32xbf16>
    %14 = vector.shape_cast %11 : vector<16x32xbf16> to vector<1x16x32xbf16>
    tpu.vector_store %arg4[%c1, %c0_11, %c0_12], %14 {strides = array<i32>} : memref<4x16x32xbf16, #tpu.memory_space<vmem>>, vector<1x16x32xbf16>,
    %15 = vector.extract_strided_slice %6 {offsets = [0, 64], sizes = [16, 32], strides = [1, 1]} : vector<16x128xbf16> to vector<16x32xbf16>
    %c2 = arith.constant 2 : index
    %c0_13 = arith.constant 0 : index
    %c0_14 = arith.constant 0 : index
    %16 = vector.load %arg4[%c2, %c0_13, %c0_14] : memref<4x16x32xbf16, #tpu.memory_space<vmem>>, vector<1x16x32xbf16>
    %17 = vector.shape_cast %16 : vector<1x16x32xbf16> to vector<16x32xbf16>
    %18 = vector.shape_cast %15 : vector<16x32xbf16> to vector<1x16x32xbf16>
    tpu.vector_store %arg4[%c2, %c0_13, %c0_14], %18 {strides = array<i32>} : memref<4x16x32xbf16, #tpu.memory_space<vmem>>, vector<1x16x32xbf16>,
    %19 = vector.extract_strided_slice %6 {offsets = [0, 96], sizes = [16, 32], strides = [1, 1]} : vector<16x128xbf16> to vector<16x32xbf16>
    %c3 = arith.constant 3 : index
    %c0_15 = arith.constant 0 : index
    %c0_16 = arith.constant 0 : index
    %20 = vector.load %arg4[%c3, %c0_15, %c0_16] : memref<4x16x32xbf16, #tpu.memory_space<vmem>>, vector<1x16x32xbf16>
    %21 = vector.shape_cast %20 : vector<1x16x32xbf16> to vector<16x32xbf16>
    %22 = vector.shape_cast %19 : vector<16x32xbf16> to vector<1x16x32xbf16>
    tpu.vector_store %arg4[%c3, %c0_15, %c0_16], %22 {strides = array<i32>} : memref<4x16x32xbf16, #tpu.memory_space<vmem>>, vector<1x16x32xbf16>,
    return
  }
  func.func @transform_0(%arg0: i32) -> (i32, i32) {
    %c0_i32 = arith.constant 0 : i32
    %c0_i32_0 = arith.constant 0 : i32
    return %arg0, %c0_i32 : i32, i32
  }
  func.func @transform_1(%arg0: i32) -> (i32, i32) {
    %c0_i32 = arith.constant 0 : i32
    %c0_i32_0 = arith.constant 0 : i32
    %c0_i32_1 = arith.constant 0 : i32
    return %c0_i32, %c0_i32_0 : i32, i32
  }
  func.func @transform_2(%arg0: i32) -> (i32, i32) {
    %c0_i32 = arith.constant 0 : i32
    %c0_i32_0 = arith.constant 0 : i32
    %c0_i32_1 = arith.constant 0 : i32
    return %c0_i32, %c0_i32_0 : i32, i32
  }
  func.func @transform_3(%arg0: i32) -> (i32, i32, i32) {
    %c0_i32 = arith.constant 0 : i32
    %c0_i32_0 = arith.constant 0 : i32
    %c0_i32_1 = arith.constant 0 : i32
    return %c0_i32, %arg0, %c0_i32_0 : i32, i32, i32
  }
  func.func @transform_4(%arg0: i32) -> (i32, i32) {
    %c0_i32 = arith.constant 0 : i32
    %c0_i32_0 = arith.constant 0 : i32
    return %arg0, %c0_i32 : i32, i32
  }
}

</mosaic_0001>

<llo_original>
// kernel: tpu_custom_call.1
$region0: #{tpu_custom_call.1}
  #allocation0 [shape = 'u32[]', space=smem, size = 0x4, offset = 0x4, fixed_abs, tag = 'smem constant byte address 0x4 - core index']
  #allocation1 [shape = 'u32[144,128]{1,0:T(1,128)}', space=vmem, size = 0x12000, scoped, tag = 'internal scratch']
  %s0 = inlined_call_operand.hbm [shape: f32[16,16], index: 0, kind: input, shape index: {}]
  %s1 = inlined_call_operand.hbm [shape: f32[16,128], index: 1, kind: input, shape index: {}]
  %s2 = inlined_call_operand.hbm [shape: f32[128,8], index: 2, kind: input, shape index: {}]
  %s3 = inlined_call_operand.hbm [shape: bf16[4,16,32], index: 3, kind: output, shape index: {0}]
  %s4 = inlined_call_operand.hbm [shape: f32[16,8], index: 4, kind: output, shape index: {1}]
  %5 = xla_tuple %s3, %s4
  %s6 = sld [smem:[#allocation0]]
  $region42: #{tpu_custom_call.1} parent=0
    _
  %s8 = ssub.s32 1, %s6
  %s9 = scalar_select 0, %s8, %s6
  $region1: #{tpu_custom_call.1} parent=0
    #allocation2 [shape = 'u8[8192]{0}', space=vmem, size = 0x2000, scoped, tag = 'input window, operand 0, single buffered']
    #allocation3 [shape = 's32[1]{0}', space=sflag, size = 0x4, scoped, tag = 'scoped memory for tpu_custom_call.1']
    #allocation4 [shape = 's32[1]{0}', space=sflag, size = 0x4, scoped, tag = 'scoped memory for tpu_custom_call.1']
    #allocation5 [shape = 'u8[8192]{0}', space=vmem, size = 0x2000, scoped, tag = 'input window, operand 1, single buffered']
    #allocation6 [shape = 's32[1]{0}', space=sflag, size = 0x4, scoped, tag = 'scoped memory for tpu_custom_call.1']
    #allocation7 [shape = 'u8[65536]{0}', space=vmem, size = 0x10000, scoped, tag = 'input window, operand 2, single buffered']
    #allocation8 [shape = 'u8[16384]{0}', space=vmem, size = 0x4000, scoped, tag = 'output window, operand 0, single buffered']
    #allocation9 [shape = 'u8[8192]{0}', space=vmem, size = 0x2000, scoped, tag = 'output window, operand 1, single buffered']
    #allocation10 [shape = 's32[1]{0}', space=sflag, size = 0x4, scoped, tag = 'scoped memory for tpu_custom_call.1']
    %10 = vsyncpa [#allocation3], 0
    %11 = vsyncpa [#allocation6], 0
    %12 = vsyncpa [#allocation4], 0
    %13 = vsyncpa [#allocation10], 0
    // Predicated region
    $region2: #{tpu_custom_call.1} parent=1 // pred_check
      _
    $region3: #{tpu_custom_call.1} parent=1 // pred_check_branch
      %15 = sbr.rel (0) target = $region5
    $region4: #{tpu_custom_call.1} parent=1 // pred_region
      %s17 = ssub.s32 256, 256
      %18 = vsyncadd [#allocation3], %s17
      %s19 = sshll.u32 [#allocation2], 4
      %s20 = int_to_ptr.vmem [resolvable:$true] %s19
      %25 = dma.hbm_to_vmem [thread:$0]  %s0, 256, %s20, [#allocation3], 128, 128, 8
    $region5: #{tpu_custom_call.1} parent=1 // pred_fallthru
      _
    // Predicated region
    $region6: #{tpu_custom_call.1} parent=1 // pred_check
      _
    $region7: #{tpu_custom_call.1} parent=1 // pred_check_branch
      %27 = sbr.rel (0) target = $region9
    $region8: #{tpu_custom_call.1} parent=1 // pred_region
      %s29 = ssub.s32 256, 256
      %30 = vsyncadd [#allocation6], %s29
      %s31 = sshll.u32 [#allocation5], 4
      %s32 = int_to_ptr.vmem [resolvable:$true] %s31
      %37 = dma.hbm_to_vmem [thread:$0]  %s1, 256, %s32, [#allocation6], 128, 128, 8
    $region9: #{tpu_custom_call.1} parent=1 // pred_fallthru
      _
    // Predicated region
    $region10: #{tpu_custom_call.1} parent=1 // pred_check
      _
    $region11: #{tpu_custom_call.1} parent=1 // pred_check_branch
      %39 = sbr.rel (0) target = $region13
    $region12: #{tpu_custom_call.1} parent=1 // pred_region
      %s41 = ssub.s32 2048, 2048
      %42 = vsyncadd [#allocation6], %s41
      %s43 = sshll.u32 [#allocation7], 4
      %s44 = int_to_ptr.vmem [resolvable:$true] %s43
      %49 = dma.hbm_to_vmem [thread:$0]  %s2, 2048, %s44, [#allocation6], 128, 128, 8
    $region13: #{tpu_custom_call.1} parent=1 // pred_fallthru
      _
    // Predicated region
    $region14: #{tpu_custom_call.1} parent=1 // pred_check
      _
    $region15: #{tpu_custom_call.1} parent=1 // pred_check_branch
      %51 = sbr.rel (0) target = $region17
    $region16: #{tpu_custom_call.1} parent=1 // pred_region
      %52 = dma.done [#allocation3], 256
    $region17: #{tpu_custom_call.1} parent=1 // pred_fallthru
      _
    // Predicated region
    $region18: #{tpu_custom_call.1} parent=1 // pred_check
      _
    $region19: #{tpu_custom_call.1} parent=1 // pred_check_branch
      %54 = sbr.rel (0) target = $region21
    $region20: #{tpu_custom_call.1} parent=1 // pred_region
      %55 = dma.done [#allocation6], 256
    $region21: #{tpu_custom_call.1} parent=1 // pred_fallthru
      _
    // Predicated region
    $region22: #{tpu_custom_call.1} parent=1 // pred_check
      _
    $region23: #{tpu_custom_call.1} parent=1 // pred_check_branch
      %57 = sbr.rel (0) target = $region25
    $region24: #{tpu_custom_call.1} parent=1 // pred_region
      %58 = dma.done [#allocation6], 2048
    $region25: #{tpu_custom_call.1} parent=1 // pred_fallthru
      _
    %v59 = vld [vmem:[#allocation2] sm:$0xff]
    %v60 = vld [vmem:[#allocation2 + $0x8] sm:$0xff]
    %v61 = vld [vmem:[#allocation5] sm:$0xff]
    %v62 = vld [vmem:[#allocation5 + $0x8] sm:$0xff]
    %vm63 = vcmask 130048
    %v65 = vsel %vm63, %v59, 0
    %v68 = vsel %vm63, %v60, 0
    %70 = vmatprep.subr.mxu0 0.0
    %71 = vmatpush1.msra.mxu0 %v61
    %72 = vmatprep.subr.mxu0 0.0
    %73 = vmatpush1.msra.mxu0 %v62
    %74 = vmatprep.subr.mxu0 0.0
    %75 = vmatpush1.msra.mxu0 0.0
    %76 = vmatprep.subr.mxu0 0.0
    %77 = vmatpush1.msra.mxu0 0.0
    %78 = vmatprep.subr.mxu0 0.0
    %79 = vmatpush1.msra.mxu0 0.0
    %80 = vmatprep.subr.mxu0 0.0
    %81 = vmatpush1.msra.mxu0 0.0
    %82 = vmatprep.subr.mxu0 0.0
    %83 = vmatpush1.msra.mxu0 0.0
    %84 = vmatprep.subr.mxu0 0.0
    %85 = vmatpush1.msra.mxu0 0.0
    %86 = vmatprep.subr.mxu0 0.0
    %87 = vmatpush1.msra.mxu0 0.0
    %88 = vmatprep.subr.mxu0 0.0
    %89 = vmatpush1.msra.mxu0 0.0
    %90 = vmatprep.subr.mxu0 0.0
    %91 = vmatpush1.msra.mxu0 0.0
    %92 = vmatprep.subr.mxu0 0.0
    %93 = vmatpush1.msra.mxu0 0.0
    %94 = vmatprep.subr.mxu0 0.0
    %95 = vmatpush1.msra.mxu0 0.0
    %96 = vmatprep.subr.mxu0 0.0
    %97 = vmatpush1.msra.mxu0 0.0
    %98 = vmatprep.subr.mxu0 0.0
    %99 = vmatpush1.msra.mxu0 0.0
    %100 = vmatprep.subr.mxu0 0.0
    %101 = vmatpush1.msra.mxu0 0.0
    %102 = vmatprep.subr.mxu0 0.0
    %103 = vmatpush1.msra.mxu0 0.0
    %104 = vmatprep.subr.mxu0 0.0
    %105 = vmatpush1.msra.mxu0 0.0
    %106 = vmatprep.subr.mxu0 0.0
    %107 = vmatpush1.msra.mxu0 0.0
    %108 = vmatprep.subr.mxu0 0.0
    %109 = vmatpush1.msra.mxu0 0.0
    %110 = vmatprep.subr.mxu0 0.0
    %111 = vmatpush1.msra.mxu0 0.0
    %112 = vmatprep.subr.mxu0 0.0
    %113 = vmatpush1.msra.mxu0 0.0
    %114 = vmatprep.subr.mxu0 0.0
    %115 = vmatpush1.msra.mxu0 0.0
    %116 = vmatprep.subr.mxu0 0.0
    %117 = vmatpush1.msra.mxu0 0.0
    %118 = vmatprep.subr.mxu0 0.0
    %119 = vmatpush1.msra.mxu0 0.0
    %120 = vmatprep.subr.mxu0 0.0
    %121 = vmatpush1.msra.mxu0 0.0
    %122 = vmatprep.subr.mxu0 0.0
    %123 = vmatpush1.msra.mxu0 0.0
    %124 = vmatprep.subr.mxu0 0.0
    %125 = vmatpush1.msra.mxu0 0.0
    %126 = vmatprep.subr.mxu0 0.0
    %127 = vmatpush1.msra.mxu0 0.0
    %128 = vmatprep.subr.mxu0 0.0
    %129 = vmatpush1.msra.mxu0 0.0
    %130 = vmatprep.subr.mxu0 0.0
    %131 = vmatpush1.msra.mxu0 0.0
    %132 = vmatprep.subr.mxu0 0.0
    %133 = vmatpush1.msra.mxu0 0.0
    %134 = vmatprep.mubr.f32.mxu0 0.0
    %135 = vmatmul.mubr.f32.gmra.mrb[0].mxu0 %v65
    %v136 = vpop.f32.mrb[0].mxu0
    %v137 = vadd.f32 0.0, %v136
    %v138 = vpop.f32.mrb[0].mxu0
    %139 = vmatprep.mubr.f32.mxu0 0.0
    %140 = vmatmul.mubr.f32.gmra.mrb[0].mxu0 %v68
    %v141 = vpop.f32.mrb[0].mxu0
    %v142 = vadd.f32 0.0, %v141
    %v143 = vpop.f32.mrb[0].mxu0
    %144 = vdwg.mxu0
    %v145 = vld [vmem:[#allocation7] sm:$0xff]
    %v146 = vld [vmem:[#allocation7 + $0x8] sm:$0xff]
    %v147 = vld [vmem:[#allocation7 + $0x10] sm:$0xff]
    %v148 = vld [vmem:[#allocation7 + $0x18] sm:$0xff]
    %v149 = vld [vmem:[#allocation7 + $0x20] sm:$0xff]
    %v150 = vld [vmem:[#allocation7 + $0x28] sm:$0xff]
    %v151 = vld [vmem:[#allocation7 + $0x30] sm:$0xff]
    %v152 = vld [vmem:[#allocation7 + $0x38] sm:$0xff]
    %v153 = vld [vmem:[#allocation7 + $0x40] sm:$0xff]
    %v154 = vld [vmem:[#allocation7 + $0x48] sm:$0xff]
    %v155 = vld [vmem:[#allocation7 + $0x50] sm:$0xff]
    %v156 = vld [vmem:[#allocation7 + $0x58] sm:$0xff]
    %v157 = vld [vmem:[#allocation7 + $0x60] sm:$0xff]
    %v158 = vld [vmem:[#allocation7 + $0x68] sm:$0xff]
    %v159 = vld [vmem:[#allocation7 + $0x70] sm:$0xff]
    %v160 = vld [vmem:[#allocation7 + $0x78] sm:$0xff]
    %161 = vmatprep.subr.mxu0 0.0
    %162 = vmatpush1.msra.mxu0 %v145
    %163 = vmatprep.subr.mxu0 0.0
    %164 = vmatpush1.msra.mxu0 %v146
    %165 = vmatprep.subr.mxu0 0.0
    %166 = vmatpush1.msra.mxu0 %v147
    %167 = vmatprep.subr.mxu0 0.0
    %168 = vmatpush1.msra.mxu0 %v148
    %169 = vmatprep.subr.mxu0 0.0
    %170 = vmatpush1.msra.mxu0 %v149
    %171 = vmatprep.subr.mxu0 0.0
    %172 = vmatpush1.msra.mxu0 %v150
    %173 = vmatprep.subr.mxu0 0.0
    %174 = vmatpush1.msra.mxu0 %v151
    %175 = vmatprep.subr.mxu0 0.0
    %176 = vmatpush1.msra.mxu0 %v152
    %177 = vmatprep.subr.mxu0 0.0
    %178 = vmatpush1.msra.mxu0 %v153
    %179 = vmatprep.subr.mxu0 0.0
    %180 = vmatpush1.msra.mxu0 %v154
    %181 = vmatprep.subr.mxu0 0.0
    %182 = vmatpush1.msra.mxu0 %v155
    %183 = vmatprep.subr.mxu0 0.0
    %184 = vmatpush1.msra.mxu0 %v156
    %185 = vmatprep.subr.mxu0 0.0
    %186 = vmatpush1.msra.mxu0 %v157
    %187 = vmatprep.subr.mxu0 0.0
    %188 = vmatpush1.msra.mxu0 %v158
    %189 = vmatprep.subr.mxu0 0.0
    %190 = vmatpush1.msra.mxu0 %v159
    %191 = vmatprep.subr.mxu0 0.0
    %192 = vmatpush1.msra.mxu0 %v160
    %193 = vmatprep.subr.mxu0 0.0
    %194 = vmatpush1.msra.mxu0 0.0
    %195 = vmatprep.subr.mxu0 0.0
    %196 = vmatpush1.msra.mxu0 0.0
    %197 = vmatprep.subr.mxu0 0.0
    %198 = vmatpush1.msra.mxu0 0.0
    %199 = vmatprep.subr.mxu0 0.0
    %200 = vmatpush1.msra.mxu0 0.0
    %201 = vmatprep.subr.mxu0 0.0
    %202 = vmatpush1.msra.mxu0 0.0
    %203 = vmatprep.subr.mxu0 0.0
    %204 = vmatpush1.msra.mxu0 0.0
    %205 = vmatprep.subr.mxu0 0.0
    %206 = vmatpush1.msra.mxu0 0.0
    %207 = vmatprep.subr.mxu0 0.0
    %208 = vmatpush1.msra.mxu0 0.0
    %209 = vmatprep.subr.mxu0 0.0
    %210 = vmatpush1.msra.mxu0 0.0
    %211 = vmatprep.subr.mxu0 0.0
    %212 = vmatpush1.msra.mxu0 0.0
    %213 = vmatprep.subr.mxu0 0.0
    %214 = vmatpush1.msra.mxu0 0.0
    %215 = vmatprep.subr.mxu0 0.0
    %216 = vmatpush1.msra.mxu0 0.0
    %217 = vmatprep.subr.mxu0 0.0
    %218 = vmatpush1.msra.mxu0 0.0
    %219 = vmatprep.subr.mxu0 0.0
    %220 = vmatpush1.msra.mxu0 0.0
    %221 = vmatprep.subr.mxu0 0.0
    %222 = vmatpush1.msra.mxu0 0.0
    %223 = vmatprep.subr.mxu0 0.0
    %224 = vmatpush1.msra.mxu0 0.0
    %225 = vmatprep.mubr.f32.mxu0 0.0
    %226 = vmatmul.mubr.f32.gmra.mrb[0].mxu0 %v137
    %v227 = vpop.f32.mrb[0].mxu0
    %v228 = vadd.f32 0.0, %v227
    %v229 = vpop.f32.mrb[0].mxu0
    %230 = vmatprep.mubr.f32.mxu0 0.0
    %231 = vmatmul.mubr.f32.gmra.mrb[0].mxu0 %v142
    %v232 = vpop.f32.mrb[0].mxu0
    %v233 = vadd.f32 0.0, %v232
    %v234 = vpop.f32.mrb[0].mxu0
    %235 = vdwg.mxu0
    %vm236 = vcmask 64512
    %237 = vst.msk [vmem:[#allocation9] sm:$0xff] %vm236, %v228
    %238 = vst.msk [vmem:[#allocation9 + $0x8] sm:$0xff] %vm236, %v233
    %v239 = vpack.c.bf16 %v142, %v137
    %v241 = vunpack.c.l.b16 %v239
    %v242 = vunpack.c.h.b16 %v239
    %v243 = vpack.c.b16 %v241, %v241
    %v244 = vpack.c.b16 %v242, %v242
    %vm247 = vcmask 257024
    %248 = vst.msk [vmem:[#allocation8] sm:$0xf] %vm247, %v243
    %249 = vst.msk [vmem:[#allocation8 + $0x4] sm:$0xf] %vm247, %v244
    %250 = vrot.lane.b32.xlu0 %v243, 96
    %v251 = vpop.permute.xlu0 %250
    %252 = vrot.lane.b32.xlu0 %v244, 96
    %v253 = vpop.permute.xlu0 %252
    %s256 = scalar_lea.vmem [#allocation8], 8
    %257 = vst.msk [vmem:[%s256] sm:$0xf] %vm247, %v251
    %258 = vst.msk [vmem:[%s256 + $0x4] sm:$0xf] %vm247, %v253
    %259 = vrot.lane.b32.xlu0 %v243, 64
    %v260 = vpop.permute.xlu0 %259
    %261 = vrot.lane.b32.xlu0 %v244, 64
    %v262 = vpop.permute.xlu0 %261
    %s265 = scalar_lea.vmem [#allocation8], 16
    %266 = vst.msk [vmem:[%s265] sm:$0xf] %vm247, %v260
    %267 = vst.msk [vmem:[%s265 + $0x4] sm:$0xf] %vm247, %v262
    %268 = vrot.lane.b32.xlu0 %v243, 32
    %v269 = vpop.permute.xlu0 %268
    %270 = vrot.lane.b32.xlu0 %v244, 32
    %v271 = vpop.permute.xlu0 %270
    %s274 = scalar_lea.vmem [#allocation8], 24
    %275 = vst.msk [vmem:[%s274] sm:$0xf] %vm247, %v269
    %276 = vst.msk [vmem:[%s274 + $0x4] sm:$0xf] %vm247, %v271
    // Predicated region
    $region26: #{tpu_custom_call.1} parent=1 // pred_check
      _
    $region27: #{tpu_custom_call.1} parent=1 // pred_check_branch
      %278 = sbr.rel (0) target = $region29
    $region28: #{tpu_custom_call.1} parent=1 // pred_region
      %s280 = ssub.s32 512, 512
      %281 = vsyncadd [#allocation4], %s280
      %s282 = sshll.u32 [#allocation8], 4
      %s283 = int_to_ptr.vmem [resolvable:$true] %s282
      %288 = dma.vmem_to_hbm [thread:$0]  %s283, 512, %s3, [#allocation4], 64, 64, 4
    $region29: #{tpu_custom_call.1} parent=1 // pred_fallthru
      _
    // Predicated region
    $region30: #{tpu_custom_call.1} parent=1 // pred_check
      _
    $region31: #{tpu_custom_call.1} parent=1 // pred_check_branch
      %290 = sbr.rel (0) target = $region33
    $region32: #{tpu_custom_call.1} parent=1 // pred_region
      %s292 = ssub.s32 256, 256
      %293 = vsyncadd [#allocation10], %s292
      %s294 = sshll.u32 [#allocation9], 4
      %s295 = int_to_ptr.vmem [resolvable:$true] %s294
      %300 = dma.vmem_to_hbm [thread:$0]  %s295, 256, %s4, [#allocation10], 128, 128, 8
    $region33: #{tpu_custom_call.1} parent=1 // pred_fallthru
      _
    // Predicated region
    $region34: #{tpu_custom_call.1} parent=1 // pred_check
      _
    $region35: #{tpu_custom_call.1} parent=1 // pred_check_branch
      %302 = sbr.rel (0) target = $region37
    $region36: #{tpu_custom_call.1} parent=1 // pred_region
      %303 = dma.done [#allocation4], 512
    $region37: #{tpu_custom_call.1} parent=1 // pred_fallthru
      _
    // Predicated region
    $region38: #{tpu_custom_call.1} parent=1 // pred_check
      _
    $region39: #{tpu_custom_call.1} parent=1 // pred_check_branch
      %305 = sbr.rel (0) target = $region41
    $region40: #{tpu_custom_call.1} parent=1 // pred_region
      %306 = dma.done [#allocation10], 256
    $region41: #{tpu_custom_call.1} parent=1 // pred_fallthru
      _
    %307 = vsyncpa [#allocation3], 1
    %308 = vsyncpa [#allocation6], 1
    %309 = vsyncpa [#allocation4], 1
    %310 = vsyncpa [#allocation10], 1

</llo_original>
